<compile_context>
chip_gen: v7x
topology: tpu7x:2x2x1
jax: 0.10.0
libtpu: 0.0.40
codegen_flags: <defaults>
</compile_context>

<pallas_src>
import functools

import jax
import jax.numpy as jnp
from jax.experimental import pallas as pl
from jax.experimental.pallas import tpu as pltpu


# ----------------------------------------------------------------------------
# One-off probe: resolve pltpu.roll's rotation direction so the conv shifts
# below are always built with the correct sign (guards against convention
# differences across JAX versions). Runs once, cached.
# ----------------------------------------------------------------------------
@functools.lru_cache(maxsize=None)
def _roll_matches_numpy() -> bool:
    def probe(x_ref, o_ref):
        o_ref[...] = pltpu.roll(x_ref[...], shift=1, axis=1)

    x = jnp.arange(8 * 128, dtype=jnp.float32).reshape(8, 128)
    y = pl.pallas_call(
        probe, out_shape=jax.ShapeDtypeStruct((8, 128), jnp.float32))(x)
    # numpy convention: result[0, 0] == x[0, 127] == 127 ; opposite: == 1.
    return bool(float(y[0, 0]) > 64.0)


# ----------------------------------------------------------------------------
# Kernel
# ----------------------------------------------------------------------------
def _contrast_block_kernel(H, W, d1, d2, roll_np,
                           x_ref, wl_ref, bl_ref, wc1_ref, bc1_ref,
                           wc2_ref, bc2_ref, bn1_ref, bn2_ref,
                           w1t_ref, b1_ref, w2_ref, b2_ref,
                           wsp_ref, bnsp_ref, out_ref):
    HW = H * W
    x = x_ref[0].astype(jnp.float32)          # (Cin, HW), lane-dense
    cin = x.shape[0]
    co = wc1_ref.shape[1]

    # Flattened spatial index -> column index (hoisted once; avoid a vector
    # int division when W is a power of two).
    idx = jax.lax.broadcasted_iota(jnp.int32, (1, HW), 1)
    if W & (W - 1) == 0:
        col_ids = jnp.bitwise_and(idx, W - 1)
    else:
        col_ids = idx % W

    def shift2d(arr, dy, dx):
        """shifted[..., y*W+x] = arr[..., (y+dy)*W + (x+dx)], zero outside."""
        if dy == 0 and dx == 0:
            return arr
        k = dy * W + dx
        amt = (-k) % HW if roll_np else k % HW
        rolled = pltpu.roll(arr, shift=amt, axis=1)        # XLU lane rotate
        conds = []
        if dy > 0:
            conds.append(idx < (H - dy) * W)               # row < H - dy
        elif dy < 0:
            conds.append(idx >= (-dy) * W)                 # row >= -dy
        if dx > 0:
            conds.append(col_ids < W - dx)
        elif dx < 0:
            conds.append(col_ids >= -dx)
        mask = conds[0]
        for c in conds[1:]:
            mask = jnp.logical_and(mask, c)
        return jnp.where(mask, rolled, 0.0)

    def conv3x3(w_taps_ref, bias_col, dil):
        """3x3 conv, padding=dil, dilation=dil, as 9 shift + MXU-matmul taps."""
        n_out = w_taps_ref.shape[1]
        acc = jnp.zeros((n_out, HW), jnp.float32)
        for ky in range(3):
            for kx in range(3):
                xs = shift2d(x, (ky - 1) * dil, (kx - 1) * dil)
                acc = acc + jnp.dot(w_taps_ref[ky * 3 + kx], xs,
                                    preferred_element_type=jnp.float32)
        return acc + bias_col

    # ---------------- local/context convs + folded BN + ReLU ----------------
    loc = conv3x3(wl_ref, bl_ref[...], 1)        # (2*co, HW): [local_1;local_2]
    ctx1 = conv3x3(wc1_ref, bc1_ref[...], d1)    # (co, HW)
    ctx2 = conv3x3(wc2_ref, bc2_ref[...], d2)    # (co, HW)

    ccl1 = jnp.maximum(bn1_ref[0] * (loc[:co] - ctx1) + bn1_ref[1], 0.0)
    ccl2 = jnp.maximum(bn2_ref[0] * (loc[co:] - ctx2) + bn2_ref[1], 0.0)
    y = jnp.concatenate([ccl1, ccl2], axis=0)    # (Cin, HW)

    # ---------------- CBAM channel gate (avg pool -> MLP -> sigmoid) --------
    pooled = jnp.sum(y, axis=1, keepdims=True) * (1.0 / HW)          # (Cin, 1)
    h = jnp.sum(w1t_ref[...] * pooled, axis=0, keepdims=True) + b1_ref[...]
    h = jnp.maximum(h, 0.0)                                          # (1, Ch)
    att = jnp.sum(w2_ref[...] * h, axis=1, keepdims=True) + b2_ref[...]
    ch_scale = pl.reciprocal(1.0 + jnp.exp(-att))                    # (Cin, 1)
    y_cg = y * ch_scale

    # ---------------- CBAM spatial gate (mean -> 7x7 conv -> BN -> sigmoid) -
    cm = jnp.sum(y_cg, axis=0, keepdims=True) * (1.0 / cin)          # (1, HW)
    conv = jnp.zeros((1, HW), jnp.float32)
    for ky in range(7):
        for kx in range(7):
            conv = conv + wsp_ref[ky, kx] * shift2d(cm, ky - 3, kx - 3)
    sp_scale = pl.reciprocal(1.0 + jnp.exp(-(bnsp_ref[0] * conv + bnsp_ref[1])))

    out_ref[0] = (y_cg * sp_scale).astype(out_ref.dtype)


# ----------------------------------------------------------------------------
# Wrapper
# ----------------------------------------------------------------------------
def contrast_block_deep_forward(x, params, d1, d2, eps=1e-5):
    """Fused Contrast_Block_Deep forward. x: (B, Cin, H, W) float32."""
    B, cin, H, W = x.shape
    HW = H * W
    co = params["w_l1"].shape[0]
    ch = params["mlp_w1"].shape[0]
    f32 = jnp.float32

    def taps(w):  # (co, cin, 3, 3) -> (9, co, cin), tap index = ky*3 + kx
        return jnp.transpose(w.astype(f32), (2, 3, 0, 1)).reshape(
            9, w.shape[0], w.shape[1])

    wl = jnp.concatenate([taps(params["w_l1"]), taps(params["w_l2"])], axis=1)
    bl = jnp.concatenate([params["b_l1"], params["b_l2"]]).astype(f32)
    bl = bl.reshape(2 * co, 1)
    wc1, bc1 = taps(params["w_c1"]), params["b_c1"].astype(f32).reshape(co, 1)
    wc2, bc2 = taps(params["w_c2"]), params["b_c2"].astype(f32).reshape(co, 1)

    def fold_bn(g, b, m, v):  # inference-mode BatchNorm -> (scale, bias)
        s = g / jnp.sqrt(v + eps)
        return jnp.stack([s, b - m * s]).astype(f32).reshape(2, -1, 1)

    bn1 = fold_bn(params["bn1_g"], params["bn1_b"],
                  params["bn1_m"], params["bn1_v"])
    bn2 = fold_bn(params["bn2_g"], params["bn2_b"],
                  params["bn2_m"], params["bn2_v"])

    w1t = params["mlp_w1"].astype(f32).T                   # (cin, ch)
    b1r = params["mlp_b1"].astype(f32).reshape(1, ch)
    w2m = params["mlp_w2"].astype(f32)                     # (cin, ch)
    b2c = params["mlp_b2"].astype(f32).reshape(cin, 1)

    sp_s = params["sp_g"][0] / jnp.sqrt(params["sp_v"][0] + eps)
    spf = jnp.stack([sp_s,
                     params["sp_b"][0] - params["sp_m"][0] * sp_s]).astype(f32)
    wsp = params["sp_w"].astype(f32).reshape(7, 7)

    kernel = functools.partial(_contrast_block_kernel, H, W, d1, d2,
                               _roll_matches_numpy())

    grid_spec = pltpu.PrefetchScalarGridSpec(
        num_scalar_prefetch=0,
        grid=(B,),
        in_specs=[
            pl.BlockSpec((1, cin, HW), lambda b: (b, 0, 0)),        # x (flat)
            pl.BlockSpec((9, 2 * co, cin), lambda b: (0, 0, 0)),    # local taps
            pl.BlockSpec((2 * co, 1), lambda b: (0, 0)),            # local bias
            pl.BlockSpec((9, co, cin), lambda b: (0, 0, 0)),        # ctx1 taps
            pl.BlockSpec((co, 1), lambda b: (0, 0)),                # ctx1 bias
            pl.BlockSpec((9, co, cin), lambda b: (0, 0, 0)),        # ctx2 taps
            pl.BlockSpec((co, 1), lambda b: (0, 0)),                # ctx2 bias
            pl.BlockSpec((2, co, 1), lambda b: (0, 0, 0)),          # bn1 fold
            pl.BlockSpec((2, co, 1), lambda b: (0, 0, 0)),          # bn2 fold
            pl.BlockSpec((cin, ch), lambda b: (0, 0)),              # mlp W1^T
            pl.BlockSpec((1, ch), lambda b: (0, 0)),                # mlp b1
            pl.BlockSpec((cin, ch), lambda b: (0, 0)),              # mlp W2
            pl.BlockSpec((cin, 1), lambda b: (0, 0)),               # mlp b2
            pl.BlockSpec(memory_space=pltpu.MemorySpace.SMEM),      # 7x7 w
            pl.BlockSpec(memory_space=pltpu.MemorySpace.SMEM),      # sp BN fold
        ],
        out_specs=pl.BlockSpec((1, cin, HW), lambda b: (b, 0, 0)),
    )

    out = pl.pallas_call(
        kernel,
        out_shape=jax.ShapeDtypeStruct((B, cin, HW), x.dtype),
        grid_spec=grid_spec,
        compiler_params=pltpu.CompilerParams(
            dimension_semantics=("parallel",)),   # v7x: batch over both TCs
    )(x.reshape(B, cin, HW), wl, bl, wc1, bc1, wc2, bc2, bn1, bn2,
      w1t, b1r, w2m, b2c, wsp, spf)

    return out.reshape(B, cin, H, W)


# ----------------------------------------------------------------------------
# Pure-JAX reference (mirrors the PyTorch forward, BatchNorm in eval mode)
# ----------------------------------------------------------------------------
def contrast_block_deep_reference(x, params, d1, d2, eps=1e-5):
    hp = jax.lax.Precision.HIGHEST

    def conv3(inp, w, b, dil):
        out = jax.lax.conv_general_dilated(
            inp, w, window_strides=(1, 1),
            padding=((dil, dil), (dil, dil)), rhs_dilation=(dil, dil),
            dimension_numbers=("NCHW", "OIHW", "NCHW"), precision=hp)
        return out + b.reshape(1, -1, 1, 1)

    def bn(t, g, b, m, v):
        return ((t - m.reshape(1, -1, 1, 1))
                / jnp.sqrt(v.reshape(1, -1, 1, 1) + eps)
                * g.reshape(1, -1, 1, 1) + b.reshape(1, -1, 1, 1))

    ccl1 = jax.nn.relu(bn(conv3(x, params["w_l1"], params["b_l1"], 1)
                          - conv3(x, params["w_c1"], params["b_c1"], d1),
                          params["bn1_g"], params["bn1_b"],
                          params["bn1_m"], params["bn1_v"]))
    ccl2 = jax.nn.relu(bn(conv3(x, params["w_l2"], params["b_l2"], 1)
                          - conv3(x, params["w_c2"], params["b_c2"], d2),
                          params["bn2_g"], params["bn2_b"],
                          params["bn2_m"], params["bn2_v"]))
    y = jnp.concatenate([ccl1, ccl2], axis=1)

    pooled = jnp.mean(y, axis=(2, 3))
    h = jax.nn.relu(jnp.dot(pooled, params["mlp_w1"].T, precision=hp)
                    + params["mlp_b1"])
    att = jnp.dot(h, params["mlp_w2"].T, precision=hp) + params["mlp_b2"]
    y_cg = y * jax.nn.sigmoid(att)[:, :, None, None]

    cm = jnp.mean(y_cg, axis=1, keepdims=True)
    sp = jax.lax.conv_general_dilated(
        cm, params["sp_w"], (1, 1), padding=((3, 3), (3, 3)),
        dimension_numbers=("NCHW", "OIHW", "NCHW"), precision=hp)
    sp = ((sp - params["sp_m"][0]) / jnp.sqrt(params["sp_v"][0] + eps)
          * params["sp_g"][0] + params["sp_b"][0])
    return y_cg * jax.nn.sigmoid(sp)


if __name__ == "__main__":
    # Small shapes consistent with the module: planes=32 -> outplanes=16,
    # CBAM gate_channels=32 with reduction_ratio=16 -> MLP hidden width 2.
    B, planes, H, W = 2, 32, 16, 16
    d1, d2 = 2, 4
    cin, co = planes, planes // 2
    ch = cin // 16

    key = jax.random.PRNGKey(0)
    ks = list(jax.random.split(key, 24))

    def nrm(k, shape, scale=1.0):
        return scale * jax.random.normal(k, shape, jnp.float32)

    cscale = 1.0 / (3.0 * cin ** 0.5)
    p = {
        "w_l1": nrm(ks[0], (co, cin, 3, 3), cscale),
        "b_l1": nrm(ks[1], (co,), 0.1),
        "w_c1": nrm(ks[2], (co, cin, 3, 3), cscale),
        "b_c1": nrm(ks[3], (co,), 0.1),
        "w_l2": nrm(ks[4], (co, cin, 3, 3), cscale),
        "b_l2": nrm(ks[5], (co,), 0.1),
        "w_c2": nrm(ks[6], (co, cin, 3, 3), cscale),
        "b_c2": nrm(ks[7], (co,), 0.1),
        "bn1_g": 1.0 + nrm(ks[8], (co,), 0.1),
        "bn1_b": nrm(ks[9], (co,), 0.1),
        "bn1_m": nrm(ks[10], (co,), 0.05),
        "bn1_v": 0.9 + 0.2 * jax.random.uniform(ks[11], (co,), jnp.float32),
        "bn2_g": 1.0 + nrm(ks[12], (co,), 0.1),
        "bn2_b": nrm(ks[13], (co,), 0.1),
        "bn2_m": nrm(ks[14], (co,), 0.05),
        "bn2_v": 0.9 + 0.2 * jax.random.uniform(ks[15], (co,), jnp.float32),
        "mlp_w1": nrm(ks[16], (ch, cin), 1.0 / cin ** 0.5),
        "mlp_b1": nrm(ks[17], (ch,), 0.1),
        "mlp_w2": nrm(ks[18], (cin, ch), 1.0 / ch ** 0.5),
        "mlp_b2": nrm(ks[19], (cin,), 0.1),
        "sp_w": nrm(ks[20], (1, 1, 7, 7), 1.0 / 7.0),
        "sp_g": jnp.array([1.2], jnp.float32),
        "sp_b": jnp.array([-0.1], jnp.float32),
        "sp_m": jnp.array([0.05], jnp.float32),
        "sp_v": jnp.array([0.9], jnp.float32),
    }

    x = nrm(ks[21], (B, cin, H, W))

    out = contrast_block_deep_forward(x, p, d1, d2)
    out = jax.block_until_ready(out)

    ref = contrast_block_deep_reference(x, p, d1, d2)
    max_err = float(jnp.max(jnp.abs(out - ref)))
    # Allow for the MXU's multi-pass f32 matmul emulation on O(1) outputs.
    assert max_err < 2e-2, f"mismatch vs reference: {max_err}"

    print("KERNEL_OK")
</pallas_src>

<mosaic_0001>
module attributes {stable_mosaic.version = 11 : i64} {
  func.func @probe(%arg0: memref<8x128xf32, #tpu.memory_space<vmem>>, %arg1: memref<8x128xf32, #tpu.memory_space<vmem>>) attributes {dimension_semantics = [], scalar_prefetch = 0 : i64, scratch_operands = 0 : i64, tpu.core_type = #tpu.core_type<tc>} {
    %c0 = arith.constant 0 : index
    %c0_0 = arith.constant 0 : index
    %0 = vector.load %arg0[%c0, %c0_0] : memref<8x128xf32, #tpu.memory_space<vmem>>, vector<8x128xf32>
    %c1_i32 = arith.constant 1 : i32
    %1 = tpu.dynamic_rotate %0 by %c1_i32 dim 1 : vector<8x128xf32>, i32 -> vector<8x128xf32>
    %c0_1 = arith.constant 0 : index
    %c0_2 = arith.constant 0 : index
    %2 = vector.load %arg1[%c0_1, %c0_2] : memref<8x128xf32, #tpu.memory_space<vmem>>, vector<8x128xf32>
    tpu.vector_store %arg1[%c0_1, %c0_2], %1 {strides = array<i32>} : memref<8x128xf32, #tpu.memory_space<vmem>>, vector<8x128xf32>,
    return
  }
}

</mosaic_0001>

<llo_original>
// kernel: tpu_custom_call.1
$region0: #{tpu_custom_call.1}
  #allocation0 [shape = 'u32[]', space=smem, size = 0x4, offset = 0x4, fixed_abs, tag = 'smem constant byte address 0x4 - core index']
  #allocation1 [shape = 'u32[144,128]{1,0:T(1,128)}', space=vmem, size = 0x12000, scoped, tag = 'internal scratch']
  %s0 = inlined_call_operand.hbm [shape: f32[8,128], index: 0, kind: input, shape index: {}]
  %s1 = inlined_call_operand.hbm [shape: f32[8,128], index: 1, kind: output, shape index: {}]
  %s2 = sld [smem:[#allocation0]]
  $region18: #{tpu_custom_call.1} parent=0
    _
  %s4 = ssub.s32 1, %s2
  %s5 = scalar_select 0, %s4, %s2
  $region1: #{tpu_custom_call.1} parent=0
    #allocation2 [shape = 'u8[4096]{0}', space=vmem, size = 0x1000, scoped, tag = 'input window, operand 0, single buffered']
    #allocation3 [shape = 's32[1]{0}', space=sflag, size = 0x4, scoped, tag = 'scoped memory for tpu_custom_call.1']
    #allocation4 [shape = 's32[1]{0}', space=sflag, size = 0x4, scoped, tag = 'scoped memory for tpu_custom_call.1']
    #allocation5 [shape = 'u8[4096]{0}', space=vmem, size = 0x1000, scoped, tag = 'output window, operand 0, single buffered']
    %6 = vsyncpa [#allocation3], 0
    %7 = vsyncpa [#allocation4], 0
    // Predicated region
    $region2: #{tpu_custom_call.1} parent=1 // pred_check
      _
    $region3: #{tpu_custom_call.1} parent=1 // pred_check_branch
      %9 = sbr.rel (0) target = $region5
    $region4: #{tpu_custom_call.1} parent=1 // pred_region
      %s11 = ssub.s32 128, 128
      %12 = vsyncadd [#allocation3], %s11
      %s14 = sshll.u32 [#allocation2], 4
      %s15 = int_to_ptr.vmem [resolvable:$true] %s14
      %17 = dma.hbm_to_vmem [thread:$0]  %s0, 128, %s15, [#allocation3]
    $region5: #{tpu_custom_call.1} parent=1 // pred_fallthru
      _
    // Predicated region
    $region6: #{tpu_custom_call.1} parent=1 // pred_check
      _
    $region7: #{tpu_custom_call.1} parent=1 // pred_check_branch
      %19 = sbr.rel (0) target = $region9
    $region8: #{tpu_custom_call.1} parent=1 // pred_region
      %20 = dma.done [#allocation3], 128
    $region9: #{tpu_custom_call.1} parent=1 // pred_fallthru
      _
    %v21 = vld [vmem:[#allocation2] sm:$0xff]
    %22 = vrot.lane.b32.xlu0 %v21, 1
    %v23 = vpop.permute.xlu0 %22
    %24 = vst [vmem:[#allocation5] sm:$0xff] %v23
    // Predicated region
    $region10: #{tpu_custom_call.1} parent=1 // pred_check
      _
    $region11: #{tpu_custom_call.1} parent=1 // pred_check_branch
      %26 = sbr.rel (0) target = $region13
    $region12: #{tpu_custom_call.1} parent=1 // pred_region
      %s28 = ssub.s32 128, 128
      %29 = vsyncadd [#allocation4], %s28
      %s31 = sshll.u32 [#allocation5], 4
      %s32 = int_to_ptr.vmem [resolvable:$true] %s31
      %34 = dma.vmem_to_hbm [thread:$0]  %s32, 128, %s1, [#allocation4]
    $region13: #{tpu_custom_call.1} parent=1 // pred_fallthru
      _
    // Predicated region
    $region14: #{tpu_custom_call.1} parent=1 // pred_check
      _
    $region15: #{tpu_custom_call.1} parent=1 // pred_check_branch
      %36 = sbr.rel (0) target = $region17
    $region16: #{tpu_custom_call.1} parent=1 // pred_region
      %37 = dma.done [#allocation4], 128
    $region17: #{tpu_custom_call.1} parent=1 // pred_fallthru
      _
    %38 = vsyncpa [#allocation3], 1
    %39 = vsyncpa [#allocation4], 1

</llo_original>
